<compile_context>
chip_gen: v7x
topology: tpu7x:2x2x1
jax: 0.10.0
libtpu: 0.0.40
codegen_flags: <defaults>
</compile_context>

<pallas_src>
import jax
import jax.numpy as jnp
from jax.experimental import pallas as pl
from jax.experimental.pallas import tpu as pltpu


# ---------------------------------------------------------------------------
# Kernel
# ---------------------------------------------------------------------------
def skipgram_kernel(idx_ref, emb_hbm, wt_ref, b_ref, out_ref,
                    gather_ref, hidden_ref, gather_sem):
    # idx_ref    : (B,) int32 in SMEM (scalar-prefetch)
    # emb_hbm    : (V, E) f32 embedding table, left in HBM (memory_space=pl.ANY)
    # wt_ref     : (E, TN) bf16 pre-transposed Linear weight tile
    # b_ref      : (1, TN) f32 bias tile
    # out_ref    : (B, TN) f32 logits tile
    # gather_ref : (B, E) f32 VMEM scratch (DMA landing buffer for the gather)
    # hidden_ref : (B, E) bf16 VMEM scratch (cast once, reused every V tile)
    # gather_sem : (B,) DMA semaphores
    B = gather_ref.shape[0]

    # Gather the B required embedding rows HBM -> VMEM once per core (first
    # V-tile of this core's sequential loop) and cast to bf16 once; the bf16
    # hidden block is reused for every subsequent vocab tile.
    @pl.when(pl.program_id(1) == 0)
    def _():
        copies = []
        for r in range(B):
            cp = pltpu.make_async_copy(
                emb_hbm.at[pl.ds(idx_ref[r], 1), :],
                gather_ref.at[pl.ds(r, 1), :],
                gather_sem.at[r],
            )
            cp.start()
            copies.append(cp)
        for cp in copies:
            cp.wait()
        hidden_ref[...] = gather_ref[...].astype(jnp.bfloat16)

    # (B, E) bf16 x (E, TN) bf16 -> (B, TN) f32 on the MXU; no transpose needed.
    logits = jnp.dot(hidden_ref[...], wt_ref[...],
                     preferred_element_type=jnp.float32)
    out_ref[...] = logits + b_ref[...]


# ---------------------------------------------------------------------------
# One-time parameter preparation (kept out of the per-call path)
# ---------------------------------------------------------------------------
def _default_num_cores():
    # v7x has 2 TensorCores per chip; v5e / v6e (Trillium) have 1.
    try:
        kind = jax.devices()[0].device_kind.lower()
    except Exception:
        return 1
    return 2 if "v7" in kind else 1


def prepare_skipgram_params(emb, w, b, *, num_cores=None, target_tn=4096,
                            weight_vmem_budget=12 * 1024 * 1024):
    """Cast / pad / transpose the parameters once and pick the tiling.

    emb: (V, E) f32 embedding table (nn.Embedding.weight)
    w  : (V, E) f32 Linear weight (PyTorch layout)
    b  : (V,)   f32 Linear bias
    """
    V, E = emb.shape
    assert w.shape == (V, E) and b.shape == (V,)
    if num_cores is None:
        num_cores = _default_num_cores()

    # Vocab tile size: big enough to amortize the ~0.35us/step overhead and
    # reach the large-block HBM-bandwidth regime, small enough that the
    # double-buffered bf16 weight tile stays within a conservative VMEM budget
    # (portable to v7x's 64 MiB-per-TC VMEM).
    tn_vmem_cap = max(128, (weight_vmem_budget // (2 * E * 2)) // 128 * 128)
    target = min(target_tn, tn_vmem_cap)
    per_core = pl.cdiv(V, num_cores)
    if per_core <= target:
        tn = max(128, pl.cdiv(per_core, 128) * 128)
    else:
        # Derive TN from V so padding waste stays at a few percent.
        n_tiles = pl.cdiv(per_core, target)
        tn = pl.cdiv(pl.cdiv(per_core, n_tiles), 512) * 512
    n_j = pl.cdiv(V, tn * num_cores)
    v_pad = n_j * tn * num_cores

    # One-time HBM passes (explicit precision choice: weight streamed as bf16,
    # f32 accumulation in the kernel).  Pre-transposed to (E, v_pad) so the
    # kernel does a natural (B,E) x (E,TN) matmul with no per-tile transpose.
    w_bf = w.astype(jnp.bfloat16)
    b_f32 = b.astype(jnp.float32)
    if v_pad != V:
        w_bf = jnp.pad(w_bf, ((0, v_pad - V), (0, 0)))
        b_f32 = jnp.pad(b_f32, (0, v_pad - V))
    wt = jnp.asarray(w_bf.T)                 # (E, v_pad) bf16, materialized once
    b2d = b_f32.reshape(1, v_pad)            # (1, v_pad) f32

    return dict(emb=emb.astype(jnp.float32), wt=wt, b2d=b2d,
                V=V, E=E, tn=tn, n_j=n_j, num_cores=num_cores, v_pad=v_pad)


# ---------------------------------------------------------------------------
# Forward (per-call path: just the pallas_call)
# ---------------------------------------------------------------------------
def skipgram_forward(x_idx, params):
    emb, wt, b2d = params["emb"], params["wt"], params["b2d"]
    V, E = params["V"], params["E"]
    tn, n_j = params["tn"], params["n_j"]
    num_cores, v_pad = params["num_cores"], params["v_pad"]

    B = x_idx.shape[0]
    idx = x_idx.astype(jnp.int32)

    grid_spec = pltpu.PrefetchScalarGridSpec(
        num_scalar_prefetch=1,
        grid=(num_cores, n_j),
        in_specs=[
            pl.BlockSpec(memory_space=pl.ANY),                          # emb table stays in HBM
            pl.BlockSpec((E, tn), lambda c, j, idx: (0, c * n_j + j)),  # weight tile (pre-transposed)
            pl.BlockSpec((1, tn), lambda c, j, idx: (0, c * n_j + j)),  # bias tile
        ],
        out_specs=pl.BlockSpec((B, tn), lambda c, j, idx: (0, c * n_j + j)),
        scratch_shapes=[
            pltpu.VMEM((B, E), jnp.float32),     # gather landing buffer
            pltpu.VMEM((B, E), jnp.bfloat16),    # bf16 hidden (cast once per core)
            pltpu.SemaphoreType.DMA((B,)),
        ],
    )

    out = pl.pallas_call(
        skipgram_kernel,
        out_shape=jax.ShapeDtypeStruct((B, v_pad), jnp.float32),
        grid_spec=grid_spec,
        compiler_params=pltpu.CompilerParams(
            dimension_semantics=("parallel", "arbitrary"),
            vmem_limit_bytes=32 * 1024 * 1024,   # safe on v5e/v6e/v7x scoped defaults
        ),
    )(idx, emb, wt, b2d)

    return out[:, :V] if v_pad != V else out


# ---------------------------------------------------------------------------
# Demo / correctness check
# ---------------------------------------------------------------------------
if __name__ == "__main__":
    # Small, deterministic setup (vocab deliberately not a multiple of 128 to
    # exercise the padding path).
    VOCAB = 1000     # vocabulary_size
    EMBED = 256      # embedding_size
    BATCH = 8        # number of center-word indices

    key = jax.random.PRNGKey(0)
    k_emb, k_w, k_b, k_x = jax.random.split(key, 4)

    # nn.Embedding.weight ~ N(0, 1); nn.Linear ~ U(-1/sqrt(in), 1/sqrt(in))
    emb = jax.random.normal(k_emb, (VOCAB, EMBED), dtype=jnp.float32)
    bound = 1.0 / (EMBED ** 0.5)
    w = jax.random.uniform(k_w, (VOCAB, EMBED), minval=-bound, maxval=bound,
                           dtype=jnp.float32)
    b = jax.random.uniform(k_b, (VOCAB,), minval=-bound, maxval=bound,
                           dtype=jnp.float32)
    x = jax.random.randint(k_x, (BATCH,), 0, VOCAB, dtype=jnp.int32)

    # One-time parameter prep (cast / pad / transpose / tiling choice).
    params = prepare_skipgram_params(emb, w, b)

    out = skipgram_forward(x, params)
    out = jax.block_until_ready(out)

    # Reference: same math as the PyTorch forward, with the same bf16
    # quantization applied to the MXU operands (f32 accumulation, f32 bias).
    hid_q = emb[x].astype(jnp.bfloat16).astype(jnp.float32)
    w_q = w.astype(jnp.bfloat16).astype(jnp.float32)
    ref = hid_q @ w_q.T + b

    assert out.shape == (BATCH, VOCAB)
    assert jnp.allclose(out, ref, atol=5e-3, rtol=5e-3), \
        float(jnp.max(jnp.abs(out - ref)))

    print("KERNEL_OK")
</pallas_src>

<mosaic_0001>
module attributes {stable_mosaic.version = 11 : i64} {
  func.func @skipgram_kernel(%arg0: i32, %arg1: i32, %arg2: memref<8xi32, #tpu.memory_space<smem>>, %arg3: memref<1000x256xf32, #tpu.memory_space<any>>, %arg4: memref<256x1024xbf16, #tpu.memory_space<vmem>>, %arg5: memref<1x1024xf32, #tpu.memory_space<vmem>>, %arg6: memref<8x1024xf32, #tpu.memory_space<vmem>>, %arg7: memref<8x256xf32, #tpu.memory_space<vmem>>, %arg8: memref<8x256xbf16, #tpu.memory_space<vmem>>, %arg9: memref<8x!tpu.dma_semaphore, #tpu.memory_space<semaphore_mem>>) attributes {dimension_semantics = [#tpu.dimension_semantics<parallel>, #tpu.dimension_semantics<arbitrary>], iteration_bounds = array<i64: 1, 1>, scalar_prefetch = 1 : i64, scratch_operands = 3 : i64, tpu.core_type = #tpu.core_type<tc>, window_params = [{}, {transform_indices = @transform_1, window_bounds = array<i64: 256, 1024>}, {transform_indices = @transform_2, window_bounds = array<i64: 1, 1024>}, {transform_indices = @transform_3, window_bounds = array<i64: 8, 1024>}]} {
    %c0_i32 = arith.constant 0 : i32
    %0 = arith.cmpi eq, %arg1, %c0_i32 : i32
    %1 = arith.extui %0 : i1 to i32
    %c0_i32_0 = arith.constant 0 : i32
    %2 = arith.cmpi ne, %1, %c0_i32_0 : i32
    scf.if %2 {
      %c0_8 = arith.constant 0 : index
      %10 = memref.load %arg2[%c0_8] : memref<8xi32, #tpu.memory_space<smem>>
      %c0_i32_9 = arith.constant 0 : i32
      %c0_i32_10 = arith.constant 0 : i32
      %11 = tpu.memref_slice %arg3[%10, %c0_i32_10] : memref<1000x256xf32, #tpu.memory_space<any>> -> memref<1x256xf32, #tpu.memory_space<any>>
      %c0_i32_11 = arith.constant 0 : i32
      %c0_i32_12 = arith.constant 0 : i32
      %12 = tpu.memref_slice %arg7[%c0_i32_11, %c0_i32_12] : memref<8x256xf32, #tpu.memory_space<vmem>> -> memref<1x256xf32, #tpu.memory_space<vmem>>
      %13 = tpu.memref_slice %arg9[%c0_i32_9] : memref<8x!tpu.dma_semaphore, #tpu.memory_space<semaphore_mem>> -> memref<1x!tpu.dma_semaphore, #tpu.memory_space<semaphore_mem>>
      %14 = tpu.memref_squeeze %13 : memref<1x!tpu.dma_semaphore, #tpu.memory_space<semaphore_mem>> -> memref<!tpu.dma_semaphore, #tpu.memory_space<semaphore_mem>>
      tpu.enqueue_dma source(%11 : memref<1x256xf32, #tpu.memory_space<any>>) target(%12 : memref<1x256xf32, #tpu.memory_space<vmem>>) target_semaphore(%14 : memref<!tpu.dma_semaphore, #tpu.memory_space<semaphore_mem>>)
      %c1 = arith.constant 1 : index
      %15 = memref.load %arg2[%c1] : memref<8xi32, #tpu.memory_space<smem>>
      %c1_i32 = arith.constant 1 : i32
      %c0_i32_13 = arith.constant 0 : i32
      %16 = tpu.memref_slice %arg3[%15, %c0_i32_13] : memref<1000x256xf32, #tpu.memory_space<any>> -> memref<1x256xf32, #tpu.memory_space<any>>
      %c1_i32_14 = arith.constant 1 : i32
      %c0_i32_15 = arith.constant 0 : i32
      %17 = tpu.memref_slice %arg7[%c1_i32_14, %c0_i32_15] : memref<8x256xf32, #tpu.memory_space<vmem>> -> memref<1x256xf32, #tpu.memory_space<vmem>>
      %18 = tpu.memref_slice %arg9[%c1_i32] : memref<8x!tpu.dma_semaphore, #tpu.memory_space<semaphore_mem>> -> memref<1x!tpu.dma_semaphore, #tpu.memory_space<semaphore_mem>>
      %19 = tpu.memref_squeeze %18 : memref<1x!tpu.dma_semaphore, #tpu.memory_space<semaphore_mem>> -> memref<!tpu.dma_semaphore, #tpu.memory_space<semaphore_mem>>
      tpu.enqueue_dma source(%16 : memref<1x256xf32, #tpu.memory_space<any>>) target(%17 : memref<1x256xf32, #tpu.memory_space<vmem>>) target_semaphore(%19 : memref<!tpu.dma_semaphore, #tpu.memory_space<semaphore_mem>>)
      %c2 = arith.constant 2 : index
      %20 = memref.load %arg2[%c2] : memref<8xi32, #tpu.memory_space<smem>>
      %c2_i32 = arith.constant 2 : i32
      %c0_i32_16 = arith.constant 0 : i32
      %21 = tpu.memref_slice %arg3[%20, %c0_i32_16] : memref<1000x256xf32, #tpu.memory_space<any>> -> memref<1x256xf32, #tpu.memory_space<any>>
      %c2_i32_17 = arith.constant 2 : i32
      %c0_i32_18 = arith.constant 0 : i32
      %22 = tpu.memref_slice %arg7[%c2_i32_17, %c0_i32_18] : memref<8x256xf32, #tpu.memory_space<vmem>> -> memref<1x256xf32, #tpu.memory_space<vmem>>
      %23 = tpu.memref_slice %arg9[%c2_i32] : memref<8x!tpu.dma_semaphore, #tpu.memory_space<semaphore_mem>> -> memref<1x!tpu.dma_semaphore, #tpu.memory_space<semaphore_mem>>
      %24 = tpu.memref_squeeze %23 : memref<1x!tpu.dma_semaphore, #tpu.memory_space<semaphore_mem>> -> memref<!tpu.dma_semaphore, #tpu.memory_space<semaphore_mem>>
      tpu.enqueue_dma source(%21 : memref<1x256xf32, #tpu.memory_space<any>>) target(%22 : memref<1x256xf32, #tpu.memory_space<vmem>>) target_semaphore(%24 : memref<!tpu.dma_semaphore, #tpu.memory_space<semaphore_mem>>)
      %c3 = arith.constant 3 : index
      %25 = memref.load %arg2[%c3] : memref<8xi32, #tpu.memory_space<smem>>
      %c3_i32 = arith.constant 3 : i32
      %c0_i32_19 = arith.constant 0 : i32
      %26 = tpu.memref_slice %arg3[%25, %c0_i32_19] : memref<1000x256xf32, #tpu.memory_space<any>> -> memref<1x256xf32, #tpu.memory_space<any>>
      %c3_i32_20 = arith.constant 3 : i32
      %c0_i32_21 = arith.constant 0 : i32
      %27 = tpu.memref_slice %arg7[%c3_i32_20, %c0_i32_21] : memref<8x256xf32, #tpu.memory_space<vmem>> -> memref<1x256xf32, #tpu.memory_space<vmem>>
      %28 = tpu.memref_slice %arg9[%c3_i32] : memref<8x!tpu.dma_semaphore, #tpu.memory_space<semaphore_mem>> -> memref<1x!tpu.dma_semaphore, #tpu.memory_space<semaphore_mem>>
      %29 = tpu.memref_squeeze %28 : memref<1x!tpu.dma_semaphore, #tpu.memory_space<semaphore_mem>> -> memref<!tpu.dma_semaphore, #tpu.memory_space<semaphore_mem>>
      tpu.enqueue_dma source(%26 : memref<1x256xf32, #tpu.memory_space<any>>) target(%27 : memref<1x256xf32, #tpu.memory_space<vmem>>) target_semaphore(%29 : memref<!tpu.dma_semaphore, #tpu.memory_space<semaphore_mem>>)
      %c4 = arith.constant 4 : index
      %30 = memref.load %arg2[%c4] : memref<8xi32, #tpu.memory_space<smem>>
      %c4_i32 = arith.constant 4 : i32
      %c0_i32_22 = arith.constant 0 : i32
      %31 = tpu.memref_slice %arg3[%30, %c0_i32_22] : memref<1000x256xf32, #tpu.memory_space<any>> -> memref<1x256xf32, #tpu.memory_space<any>>
      %c4_i32_23 = arith.constant 4 : i32
      %c0_i32_24 = arith.constant 0 : i32
      %32 = tpu.memref_slice %arg7[%c4_i32_23, %c0_i32_24] : memref<8x256xf32, #tpu.memory_space<vmem>> -> memref<1x256xf32, #tpu.memory_space<vmem>>
      %33 = tpu.memref_slice %arg9[%c4_i32] : memref<8x!tpu.dma_semaphore, #tpu.memory_space<semaphore_mem>> -> memref<1x!tpu.dma_semaphore, #tpu.memory_space<semaphore_mem>>
      %34 = tpu.memref_squeeze %33 : memref<1x!tpu.dma_semaphore, #tpu.memory_space<semaphore_mem>> -> memref<!tpu.dma_semaphore, #tpu.memory_space<semaphore_mem>>
      tpu.enqueue_dma source(%31 : memref<1x256xf32, #tpu.memory_space<any>>) target(%32 : memref<1x256xf32, #tpu.memory_space<vmem>>) target_semaphore(%34 : memref<!tpu.dma_semaphore, #tpu.memory_space<semaphore_mem>>)
      %c5 = arith.constant 5 : index
      %35 = memref.load %arg2[%c5] : memref<8xi32, #tpu.memory_space<smem>>
      %c5_i32 = arith.constant 5 : i32
      %c0_i32_25 = arith.constant 0 : i32
      %36 = tpu.memref_slice %arg3[%35, %c0_i32_25] : memref<1000x256xf32, #tpu.memory_space<any>> -> memref<1x256xf32, #tpu.memory_space<any>>
      %c5_i32_26 = arith.constant 5 : i32
      %c0_i32_27 = arith.constant 0 : i32
      %37 = tpu.memref_slice %arg7[%c5_i32_26, %c0_i32_27] : memref<8x256xf32, #tpu.memory_space<vmem>> -> memref<1x256xf32, #tpu.memory_space<vmem>>
      %38 = tpu.memref_slice %arg9[%c5_i32] : memref<8x!tpu.dma_semaphore, #tpu.memory_space<semaphore_mem>> -> memref<1x!tpu.dma_semaphore, #tpu.memory_space<semaphore_mem>>
      %39 = tpu.memref_squeeze %38 : memref<1x!tpu.dma_semaphore, #tpu.memory_space<semaphore_mem>> -> memref<!tpu.dma_semaphore, #tpu.memory_space<semaphore_mem>>
      tpu.enqueue_dma source(%36 : memref<1x256xf32, #tpu.memory_space<any>>) target(%37 : memref<1x256xf32, #tpu.memory_space<vmem>>) target_semaphore(%39 : memref<!tpu.dma_semaphore, #tpu.memory_space<semaphore_mem>>)
      %c6 = arith.constant 6 : index
      %40 = memref.load %arg2[%c6] : memref<8xi32, #tpu.memory_space<smem>>
      %c6_i32 = arith.constant 6 : i32
      %c0_i32_28 = arith.constant 0 : i32
      %41 = tpu.memref_slice %arg3[%40, %c0_i32_28] : memref<1000x256xf32, #tpu.memory_space<any>> -> memref<1x256xf32, #tpu.memory_space<any>>
      %c6_i32_29 = arith.constant 6 : i32
      %c0_i32_30 = arith.constant 0 : i32
      %42 = tpu.memref_slice %arg7[%c6_i32_29, %c0_i32_30] : memref<8x256xf32, #tpu.memory_space<vmem>> -> memref<1x256xf32, #tpu.memory_space<vmem>>
      %43 = tpu.memref_slice %arg9[%c6_i32] : memref<8x!tpu.dma_semaphore, #tpu.memory_space<semaphore_mem>> -> memref<1x!tpu.dma_semaphore, #tpu.memory_space<semaphore_mem>>
      %44 = tpu.memref_squeeze %43 : memref<1x!tpu.dma_semaphore, #tpu.memory_space<semaphore_mem>> -> memref<!tpu.dma_semaphore, #tpu.memory_space<semaphore_mem>>
      tpu.enqueue_dma source(%41 : memref<1x256xf32, #tpu.memory_space<any>>) target(%42 : memref<1x256xf32, #tpu.memory_space<vmem>>) target_semaphore(%44 : memref<!tpu.dma_semaphore, #tpu.memory_space<semaphore_mem>>)
      %c7 = arith.constant 7 : index
      %45 = memref.load %arg2[%c7] : memref<8xi32, #tpu.memory_space<smem>>
      %c7_i32 = arith.constant 7 : i32
      %c0_i32_31 = arith.constant 0 : i32
      %46 = tpu.memref_slice %arg3[%45, %c0_i32_31] : memref<1000x256xf32, #tpu.memory_space<any>> -> memref<1x256xf32, #tpu.memory_space<any>>
      %c7_i32_32 = arith.constant 7 : i32
      %c0_i32_33 = arith.constant 0 : i32
      %47 = tpu.memref_slice %arg7[%c7_i32_32, %c0_i32_33] : memref<8x256xf32, #tpu.memory_space<vmem>> -> memref<1x256xf32, #tpu.memory_space<vmem>>
      %48 = tpu.memref_slice %arg9[%c7_i32] : memref<8x!tpu.dma_semaphore, #tpu.memory_space<semaphore_mem>> -> memref<1x!tpu.dma_semaphore, #tpu.memory_space<semaphore_mem>>
      %49 = tpu.memref_squeeze %48 : memref<1x!tpu.dma_semaphore, #tpu.memory_space<semaphore_mem>> -> memref<!tpu.dma_semaphore, #tpu.memory_space<semaphore_mem>>
      tpu.enqueue_dma source(%46 : memref<1x256xf32, #tpu.memory_space<any>>) target(%47 : memref<1x256xf32, #tpu.memory_space<vmem>>) target_semaphore(%49 : memref<!tpu.dma_semaphore, #tpu.memory_space<semaphore_mem>>)
      %c0_i32_34 = arith.constant 0 : i32
      %c0_i32_35 = arith.constant 0 : i32
      %50 = tpu.memref_slice %arg3[%10, %c0_i32_35] : memref<1000x256xf32, #tpu.memory_space<any>> -> memref<1x256xf32, #tpu.memory_space<any>>
      %c0_i32_36 = arith.constant 0 : i32
      %c0_i32_37 = arith.constant 0 : i32
      %51 = tpu.memref_slice %arg7[%c0_i32_36, %c0_i32_37] : memref<8x256xf32, #tpu.memory_space<vmem>> -> memref<1x256xf32, #tpu.memory_space<vmem>>
      %52 = tpu.memref_slice %arg9[%c0_i32_34] : memref<8x!tpu.dma_semaphore, #tpu.memory_space<semaphore_mem>> -> memref<1x!tpu.dma_semaphore, #tpu.memory_space<semaphore_mem>>
      %53 = tpu.memref_squeeze %52 : memref<1x!tpu.dma_semaphore, #tpu.memory_space<semaphore_mem>> -> memref<!tpu.dma_semaphore, #tpu.memory_space<semaphore_mem>>
      tpu.wait_dma2 semaphore(%53 : memref<!tpu.dma_semaphore, #tpu.memory_space<semaphore_mem>>) src(%50 : memref<1x256xf32, #tpu.memory_space<any>>) dst(%51 : memref<1x256xf32, #tpu.memory_space<vmem>>)
      %c1_i32_38 = arith.constant 1 : i32
      %c0_i32_39 = arith.constant 0 : i32
      %54 = tpu.memref_slice %arg3[%15, %c0_i32_39] : memref<1000x256xf32, #tpu.memory_space<any>> -> memref<1x256xf32, #tpu.memory_space<any>>
      %c1_i32_40 = arith.constant 1 : i32
      %c0_i32_41 = arith.constant 0 : i32
      %55 = tpu.memref_slice %arg7[%c1_i32_40, %c0_i32_41] : memref<8x256xf32, #tpu.memory_space<vmem>> -> memref<1x256xf32, #tpu.memory_space<vmem>>
      %56 = tpu.memref_slice %arg9[%c1_i32_38] : memref<8x!tpu.dma_semaphore, #tpu.memory_space<semaphore_mem>> -> memref<1x!tpu.dma_semaphore, #tpu.memory_space<semaphore_mem>>
      %57 = tpu.memref_squeeze %56 : memref<1x!tpu.dma_semaphore, #tpu.memory_space<semaphore_mem>> -> memref<!tpu.dma_semaphore, #tpu.memory_space<semaphore_mem>>
      tpu.wait_dma2 semaphore(%57 : memref<!tpu.dma_semaphore, #tpu.memory_space<semaphore_mem>>) src(%54 : memref<1x256xf32, #tpu.memory_space<any>>) dst(%55 : memref<1x256xf32, #tpu.memory_space<vmem>>)
      %c2_i32_42 = arith.constant 2 : i32
      %c0_i32_43 = arith.constant 0 : i32
      %58 = tpu.memref_slice %arg3[%20, %c0_i32_43] : memref<1000x256xf32, #tpu.memory_space<any>> -> memref<1x256xf32, #tpu.memory_space<any>>
      %c2_i32_44 = arith.constant 2 : i32
      %c0_i32_45 = arith.constant 0 : i32
      %59 = tpu.memref_slice %arg7[%c2_i32_44, %c0_i32_45] : memref<8x256xf32, #tpu.memory_space<vmem>> -> memref<1x256xf32, #tpu.memory_space<vmem>>
      %60 = tpu.memref_slice %arg9[%c2_i32_42] : memref<8x!tpu.dma_semaphore, #tpu.memory_space<semaphore_mem>> -> memref<1x!tpu.dma_semaphore, #tpu.memory_space<semaphore_mem>>
      %61 = tpu.memref_squeeze %60 : memref<1x!tpu.dma_semaphore, #tpu.memory_space<semaphore_mem>> -> memref<!tpu.dma_semaphore, #tpu.memory_space<semaphore_mem>>
      tpu.wait_dma2 semaphore(%61 : memref<!tpu.dma_semaphore, #tpu.memory_space<semaphore_mem>>) src(%58 : memref<1x256xf32, #tpu.memory_space<any>>) dst(%59 : memref<1x256xf32, #tpu.memory_space<vmem>>)
      %c3_i32_46 = arith.constant 3 : i32
      %c0_i32_47 = arith.constant 0 : i32
      %62 = tpu.memref_slice %arg3[%25, %c0_i32_47] : memref<1000x256xf32, #tpu.memory_space<any>> -> memref<1x256xf32, #tpu.memory_space<any>>
      %c3_i32_48 = arith.constant 3 : i32
      %c0_i32_49 = arith.constant 0 : i32
      %63 = tpu.memref_slice %arg7[%c3_i32_48, %c0_i32_49] : memref<8x256xf32, #tpu.memory_space<vmem>> -> memref<1x256xf32, #tpu.memory_space<vmem>>
      %64 = tpu.memref_slice %arg9[%c3_i32_46] : memref<8x!tpu.dma_semaphore, #tpu.memory_space<semaphore_mem>> -> memref<1x!tpu.dma_semaphore, #tpu.memory_space<semaphore_mem>>
      %65 = tpu.memref_squeeze %64 : memref<1x!tpu.dma_semaphore, #tpu.memory_space<semaphore_mem>> -> memref<!tpu.dma_semaphore, #tpu.memory_space<semaphore_mem>>
      tpu.wait_dma2 semaphore(%65 : memref<!tpu.dma_semaphore, #tpu.memory_space<semaphore_mem>>) src(%62 : memref<1x256xf32, #tpu.memory_space<any>>) dst(%63 : memref<1x256xf32, #tpu.memory_space<vmem>>)
      %c4_i32_50 = arith.constant 4 : i32
      %c0_i32_51 = arith.constant 0 : i32
      %66 = tpu.memref_slice %arg3[%30, %c0_i32_51] : memref<1000x256xf32, #tpu.memory_space<any>> -> memref<1x256xf32, #tpu.memory_space<any>>
      %c4_i32_52 = arith.constant 4 : i32
      %c0_i32_53 = arith.constant 0 : i32
      %67 = tpu.memref_slice %arg7[%c4_i32_52, %c0_i32_53] : memref<8x256xf32, #tpu.memory_space<vmem>> -> memref<1x256xf32, #tpu.memory_space<vmem>>
      %68 = tpu.memref_slice %arg9[%c4_i32_50] : memref<8x!tpu.dma_semaphore, #tpu.memory_space<semaphore_mem>> -> memref<1x!tpu.dma_semaphore, #tpu.memory_space<semaphore_mem>>
      %69 = tpu.memref_squeeze %68 : memref<1x!tpu.dma_semaphore, #tpu.memory_space<semaphore_mem>> -> memref<!tpu.dma_semaphore, #tpu.memory_space<semaphore_mem>>
      tpu.wait_dma2 semaphore(%69 : memref<!tpu.dma_semaphore, #tpu.memory_space<semaphore_mem>>) src(%66 : memref<1x256xf32, #tpu.memory_space<any>>) dst(%67 : memref<1x256xf32, #tpu.memory_space<vmem>>)
      %c5_i32_54 = arith.constant 5 : i32
      %c0_i32_55 = arith.constant 0 : i32
      %70 = tpu.memref_slice %arg3[%35, %c0_i32_55] : memref<1000x256xf32, #tpu.memory_space<any>> -> memref<1x256xf32, #tpu.memory_space<any>>
      %c5_i32_56 = arith.constant 5 : i32
      %c0_i32_57 = arith.constant 0 : i32
      %71 = tpu.memref_slice %arg7[%c5_i32_56, %c0_i32_57] : memref<8x256xf32, #tpu.memory_space<vmem>> -> memref<1x256xf32, #tpu.memory_space<vmem>>
      %72 = tpu.memref_slice %arg9[%c5_i32_54] : memref<8x!tpu.dma_semaphore, #tpu.memory_space<semaphore_mem>> -> memref<1x!tpu.dma_semaphore, #tpu.memory_space<semaphore_mem>>
      %73 = tpu.memref_squeeze %72 : memref<1x!tpu.dma_semaphore, #tpu.memory_space<semaphore_mem>> -> memref<!tpu.dma_semaphore, #tpu.memory_space<semaphore_mem>>
      tpu.wait_dma2 semaphore(%73 : memref<!tpu.dma_semaphore, #tpu.memory_space<semaphore_mem>>) src(%70 : memref<1x256xf32, #tpu.memory_space<any>>) dst(%71 : memref<1x256xf32, #tpu.memory_space<vmem>>)
      %c6_i32_58 = arith.constant 6 : i32
      %c0_i32_59 = arith.constant 0 : i32
      %74 = tpu.memref_slice %arg3[%40, %c0_i32_59] : memref<1000x256xf32, #tpu.memory_space<any>> -> memref<1x256xf32, #tpu.memory_space<any>>
      %c6_i32_60 = arith.constant 6 : i32
      %c0_i32_61 = arith.constant 0 : i32
      %75 = tpu.memref_slice %arg7[%c6_i32_60, %c0_i32_61] : memref<8x256xf32, #tpu.memory_space<vmem>> -> memref<1x256xf32, #tpu.memory_space<vmem>>
      %76 = tpu.memref_slice %arg9[%c6_i32_58] : memref<8x!tpu.dma_semaphore, #tpu.memory_space<semaphore_mem>> -> memref<1x!tpu.dma_semaphore, #tpu.memory_space<semaphore_mem>>
      %77 = tpu.memref_squeeze %76 : memref<1x!tpu.dma_semaphore, #tpu.memory_space<semaphore_mem>> -> memref<!tpu.dma_semaphore, #tpu.memory_space<semaphore_mem>>
      tpu.wait_dma2 semaphore(%77 : memref<!tpu.dma_semaphore, #tpu.memory_space<semaphore_mem>>) src(%74 : memref<1x256xf32, #tpu.memory_space<any>>) dst(%75 : memref<1x256xf32, #tpu.memory_space<vmem>>)
      %c7_i32_62 = arith.constant 7 : i32
      %c0_i32_63 = arith.constant 0 : i32
      %78 = tpu.memref_slice %arg3[%45, %c0_i32_63] : memref<1000x256xf32, #tpu.memory_space<any>> -> memref<1x256xf32, #tpu.memory_space<any>>
      %c7_i32_64 = arith.constant 7 : i32
      %c0_i32_65 = arith.constant 0 : i32
      %79 = tpu.memref_slice %arg7[%c7_i32_64, %c0_i32_65] : memref<8x256xf32, #tpu.memory_space<vmem>> -> memref<1x256xf32, #tpu.memory_space<vmem>>
      %80 = tpu.memref_slice %arg9[%c7_i32_62] : memref<8x!tpu.dma_semaphore, #tpu.memory_space<semaphore_mem>> -> memref<1x!tpu.dma_semaphore, #tpu.memory_space<semaphore_mem>>
      %81 = tpu.memref_squeeze %80 : memref<1x!tpu.dma_semaphore, #tpu.memory_space<semaphore_mem>> -> memref<!tpu.dma_semaphore, #tpu.memory_space<semaphore_mem>>
      tpu.wait_dma2 semaphore(%81 : memref<!tpu.dma_semaphore, #tpu.memory_space<semaphore_mem>>) src(%78 : memref<1x256xf32, #tpu.memory_space<any>>) dst(%79 : memref<1x256xf32, #tpu.memory_space<vmem>>)
      %c0_66 = arith.constant 0 : index
      %c0_67 = arith.constant 0 : index
      %82 = vector.load %arg7[%c0_66, %c0_67] : memref<8x256xf32, #tpu.memory_space<vmem>>, vector<8x256xf32>
      %83 = arith.truncf %82 : vector<8x256xf32> to vector<8x256xbf16>
      %c0_68 = arith.constant 0 : index
      %c0_69 = arith.constant 0 : index
      %84 = vector.load %arg8[%c0_68, %c0_69] : memref<8x256xbf16, #tpu.memory_space<vmem>>, vector<8x256xbf16>
      tpu.vector_store %arg8[%c0_68, %c0_69], %83 {strides = array<i32>} : memref<8x256xbf16, #tpu.memory_space<vmem>>, vector<8x256xbf16>,
    } else {
    }
    %c0 = arith.constant 0 : index
    %c0_1 = arith.constant 0 : index
    %3 = vector.load %arg8[%c0, %c0_1] : memref<8x256xbf16, #tpu.memory_space<vmem>>, vector<8x256xbf16>
    %c0_2 = arith.constant 0 : index
    %c0_3 = arith.constant 0 : index
    %4 = vector.load %arg4[%c0_2, %c0_3] : memref<256x1024xbf16, #tpu.memory_space<vmem>>, vector<256x1024xbf16>
    %cst = arith.constant dense<0.000000e+00> : vector<8x1024xf32>
    %5 = tpu.matmul %3, %4, %cst {dimension_numbers = #tpu.dot_dimension_numbers<[1], [0], [0], [1], [0, 0, 1, 1], [], []>} : vector<8x256xbf16>, vector<256x1024xbf16>, vector<8x1024xf32> -> vector<8x1024xf32>
    %c0_4 = arith.constant 0 : index
    %c0_5 = arith.constant 0 : index
    %6 = vector.load %arg5[%c0_4, %c0_5] : memref<1x1024xf32, #tpu.memory_space<vmem>>, vector<1x1024xf32>
    %7 = vector.broadcast %6 : vector<1x1024xf32> to vector<8x1024xf32>
    %8 = arith.addf %5, %7 : vector<8x1024xf32>
    %c0_6 = arith.constant 0 : index
    %c0_7 = arith.constant 0 : index
    %9 = vector.load %arg6[%c0_6, %c0_7] : memref<8x1024xf32, #tpu.memory_space<vmem>>, vector<8x1024xf32>
    tpu.vector_store %arg6[%c0_6, %c0_7], %8 {strides = array<i32>} : memref<8x1024xf32, #tpu.memory_space<vmem>>, vector<8x1024xf32>,
    return
  }
  func.func @transform_1(%arg0: i32, %arg1: i32, %arg2: memref<8xi32, #tpu.memory_space<smem>>) -> (i32, i32) {
    %c1_i32 = arith.constant 1 : i32
    %0 = arith.muli %arg0, %c1_i32 : i32
    %1 = arith.addi %0, %arg1 : i32
    %c0_i32 = arith.constant 0 : i32
    %c0_i32_0 = arith.constant 0 : i32
    return %c0_i32, %1 : i32, i32
  }
  func.func @transform_2(%arg0: i32, %arg1: i32, %arg2: memref<8xi32, #tpu.memory_space<smem>>) -> (i32, i32) {
    %c1_i32 = arith.constant 1 : i32
    %0 = arith.muli %arg0, %c1_i32 : i32
    %1 = arith.addi %0, %arg1 : i32
    %c0_i32 = arith.constant 0 : i32
    %c0_i32_0 = arith.constant 0 : i32
    return %c0_i32, %1 : i32, i32
  }
  func.func @transform_3(%arg0: i32, %arg1: i32, %arg2: memref<8xi32, #tpu.memory_space<smem>>) -> (i32, i32) {
    %c1_i32 = arith.constant 1 : i32
    %0 = arith.muli %arg0, %c1_i32 : i32
    %1 = arith.addi %0, %arg1 : i32
    %c0_i32 = arith.constant 0 : i32
    %c0_i32_0 = arith.constant 0 : i32
    return %c0_i32, %1 : i32, i32
  }
}

</mosaic_0001>

<llo_original>
// kernel: tpu_custom_call.1
$region0: #{tpu_custom_call.1}
  #allocation0 [shape = 'u32[]', space=smem, size = 0x4, offset = 0x4, fixed_abs, tag = 'smem constant byte address 0x4 - core index']
  #allocation1 [shape = 'u32[144,128]{1,0:T(1,128)}', space=vmem, size = 0x12000, scoped, tag = 'internal scratch']
  #allocation2 [shape = 'f32[8,256]{1,0:T(8,128)}', space=vmem, size = 0x2000, scoped, tag = 'scratch operand']
  #allocation3 [shape = 'bf16[8,256]{1,0:T(8,128)(2,1)}', space=vmem, size = 0x1000, scoped, tag = 'scratch operand']
  #allocation4 [shape = 's32[8]{0}', space=sflag, size = 0x20, scoped, tag = 'scratch operand']
  #allocation5 [shape = 's32[1]{0}', space=sflag, size = 0x4, scoped, tag = 'scoped memory for tpu_custom_call.1']
  #allocation6 [shape = 'u8[512]{0}', space=smem, size = 0x200, scoped, tag = 'prefetched SMEM operand 0']
  #allocation11 [shape = 's32[]', space=sflag, size = 0x4, offset = 0, fixed_abs, tag = 'sflag constant byte address 0x0 - dummy sync flag']
  #allocation12 [shape = 's32[]', space=sflag, size = 0x4, offset = 0, fixed_abs, tag = 'sflag constant byte address 0x0 - dummy sync flag']
  #allocation13 [shape = 's32[]', space=sflag, size = 0x4, offset = 0, fixed_abs, tag = 'sflag constant byte address 0x0 - dummy sync flag']
  #allocation14 [shape = 's32[]', space=sflag, size = 0x4, offset = 0, fixed_abs, tag = 'sflag constant byte address 0x0 - dummy sync flag']
  #allocation15 [shape = 's32[]', space=sflag, size = 0x4, offset = 0, fixed_abs, tag = 'sflag constant byte address 0x0 - dummy sync flag']
  #allocation16 [shape = 's32[]', space=sflag, size = 0x4, offset = 0, fixed_abs, tag = 'sflag constant byte address 0x0 - dummy sync flag']
  #allocation17 [shape = 's32[]', space=sflag, size = 0x4, offset = 0, fixed_abs, tag = 'sflag constant byte address 0x0 - dummy sync flag']
  #allocation18 [shape = 's32[]', space=sflag, size = 0x4, offset = 0, fixed_abs, tag = 'sflag constant byte address 0x0 - dummy sync flag']
  %s0 = inlined_call_operand.hbm [shape: s32[8], index: 0, kind: input, shape index: {}]
  %s1 = inlined_call_operand.hbm [shape: f32[1000,256], index: 1, kind: input, shape index: {}]
  %s2 = inlined_call_operand.hbm [shape: bf16[256,1024], index: 2, kind: input, shape index: {}]
  %s3 = inlined_call_operand.vmem [shape: f32[1,1024], index: 3, kind: input, shape index: {}]
  %s4 = inlined_call_operand.hbm [shape: f32[8,1024], index: 4, kind: output, shape index: {}]
  %s5 = sld [smem:[#allocation0]]
  $region26: #{tpu_custom_call.1} parent=0
    _
  %s7 = ssub.s32 1, %s5
  %s8 = scalar_select 0, %s7, %s5
  %10 = dma.hbm_to_smem %s0, 16, [#allocation6], [#allocation5]
  %11 = dma.done [#allocation5], 16
  %12 = sfence
  $region1: #{tpu_custom_call.1} parent=0
    #allocation7 [shape = 'u8[524288]{0}', space=vmem, size = 0x80000, scoped, tag = 'input window, operand 2, single buffered']
    #allocation8 [shape = 's32[1]{0}', space=sflag, size = 0x4, scoped, tag = 'scoped memory for tpu_custom_call.1']
    #allocation9 [shape = 's32[1]{0}', space=sflag, size = 0x4, scoped, tag = 'scoped memory for tpu_custom_call.1']
    #allocation10 [shape = 'u8[32768]{0}', space=vmem, size = 0x8000, scoped, tag = 'output window, operand 0, single buffered']
    %13 = vsyncpa [#allocation8], 0
    %14 = vsyncpa [#allocation9], 0
    // Predicated region
    $region2: #{tpu_custom_call.1} parent=1 // pred_check
      _
    $region3: #{tpu_custom_call.1} parent=1 // pred_check_branch
      %16 = sbr.rel (0) target = $region5
    $region4: #{tpu_custom_call.1} parent=1 // pred_region
      %s17 = sadd.s32 0, 0
      %s18 = smul.u32 8, %s17
      %s20 = ssub.s32 16384, 16384
      %21 = vsyncadd [#allocation8], %s20
      %s22 = smul.addr %s18, 64
      %s23 = scalar_lea.hbm %s2, %s22
      %s24 = sshll.u32 [#allocation7], 4
      %s25 = int_to_ptr.vmem [resolvable:$true] %s24
      %30 = dma.hbm_to_vmem [thread:$0]  %s23, 16384, %s25, [#allocation8], 512, 512, 32
    $region5: #{tpu_custom_call.1} parent=1 // pred_fallthru
      _
    // Predicated region
    $region6: #{tpu_custom_call.1} parent=1 // pred_check
      _
    $region7: #{tpu_custom_call.1} parent=1 // pred_check_branch
      %32 = sbr.rel (0) target = $region9
    $region8: #{tpu_custom_call.1} parent=1 // pred_region
      %s33 = sadd.s32 0, 0
      %s34 = smul.u32 8, %s33
      %p35 = scmp.lt.s32.totalorder %s34, 7
      %s36 = scalar_select %p35, %s34, 7
      %s37 = scalar_lea.vmem %s3, %s36
      %s38 = sadd.s32 0, 0
      %s39 = smul.u32 8, %s38
    $region9: #{tpu_custom_call.1} parent=1 // pred_fallthru
      _
    // Predicated region
    $region10: #{tpu_custom_call.1} parent=1 // pred_check
      _
    $region11: #{tpu_custom_call.1} parent=1 // pred_check_branch
      %41 = sbr.rel (0) target = $region13
    $region12: #{tpu_custom_call.1} parent=1 // pred_region
      %42 = dma.done [#allocation8], 16384
    $region13: #{tpu_custom_call.1} parent=1 // pred_fallthru
      _
    %s43 = sadd.s32 0, 0
    %s44 = smul.u32 8, %s43
    %p45 = scmp.lt.s32.totalorder %s44, 7
    %s46 = scalar_select %p45, %s44, 7
    %s47 = scalar_lea.vmem %s3, %s46
    %s48 = sadd.s32 0, 0
    %s49 = smul.u32 8, %s48
    %s50 = sadd.s32 0, 0
    %s51 = smul.u32 8, %s50
    %p52 = scmp.lt.s32.totalorder %s51, 7
    %s53 = scalar_select %p52, %s51, 7
    %s54 = scalar_lea.vmem %s3, %s53
    %s55 = sadd.s32 0, 0
    %s56 = smul.u32 8, %s55
    %s57 = sadd.s32 0, 0
    %s58 = smul.u32 8, %s57
    %p59 = scmp.eq.s32.totalorder 0, 0
    // Predicated region
    $region14: #{tpu_custom_call.1} parent=1 // pred_check
      %p60 = pneg %p59
    $region15: #{tpu_custom_call.1} parent=1 // pred_check_branch
      %62 = sbr.rel (%p60) target = $region17
    $region16: #{tpu_custom_call.1} parent=1 // pred_region
      %s63 = sld [smem:[#allocation6]]
      %s64 = sshrl.u32 %s63, 3
      %s65 = sand.u32 %s63, 7
      %s66 = smul.u32 %s64, 16
      %s67 = sadd.s32 %s65, %s66
      %s68 = smul.addr %s67, 16
      %s69 = scalar_lea.hbm %s1, %s68
      %s71 = sshll.u32 [#allocation2], 4
      %s72 = int_to_ptr.vmem [resolvable:$true] %s71
      %74 = dma.hbm_to_vmem [thread:$0]  %s69, 32, %s72, [#allocation4], 128, 128, 1
      %s75 = sld [smem:[#allocation6 + $0x1]]
      %s76 = sshrl.u32 %s75, 3
      %s77 = sand.u32 %s75, 7
      %s78 = smul.u32 %s76, 16
      %s79 = sadd.s32 %s77, %s78
      %s80 = smul.addr %s79, 16
      %s81 = scalar_lea.hbm %s1, %s80
      %s82 = scalar_lea.vmem [#allocation2], 1
      %s83 = scalar_lea.sflag [#allocation4], 1
      %s85 = sshll.u32 %s82, 4
      %s86 = int_to_ptr.vmem [resolvable:$true] %s85
      %88 = dma.hbm_to_vmem [thread:$0]  %s81, 32, %s86, %s83, 128, 128, 1
      %s89 = sld [smem:[#allocation6 + $0x2]]
      %s90 = sshrl.u32 %s89, 3
      %s91 = sand.u32 %s89, 7
      %s92 = smul.u32 %s90, 16
      %s93 = sadd.s32 %s91, %s92
      %s94 = smul.addr %s93, 16
      %s95 = scalar_lea.hbm %s1, %s94
      %s96 = scalar_lea.vmem [#allocation2], 2
      %s97 = scalar_lea.sflag [#allocation4], 2
      %s99 = sshll.u32 %s96, 4
      %s100 = int_to_ptr.vmem [resolvable:$true] %s99
      %102 = dma.hbm_to_vmem [thread:$0]  %s95, 32, %s100, %s97, 128, 128, 1
      %s103 = sld [smem:[#allocation6 + $0x3]]
      %s104 = sshrl.u32 %s103, 3
      %s105 = sand.u32 %s103, 7
      %s106 = smul.u32 %s104, 16
      %s107 = sadd.s32 %s105, %s106
      %s108 = smul.addr %s107, 16
      %s109 = scalar_lea.hbm %s1, %s108
      %s110 = scalar_lea.vmem [#allocation2], 3
      %s111 = scalar_lea.sflag [#allocation4], 3
      %s113 = sshll.u32 %s110, 4
      %s114 = int_to_ptr.vmem [resolvable:$true] %s113
      %116 = dma.hbm_to_vmem [thread:$0]  %s109, 32, %s114, %s111, 128, 128, 1
      %s117 = sld [smem:[#allocation6 + $0x4]]
      %s118 = sshrl.u32 %s117, 3
      %s119 = sand.u32 %s117, 7
      %s120 = smul.u32 %s118, 16
      %s121 = sadd.s32 %s119, %s120
      %s122 = smul.addr %s121, 16
      %s123 = scalar_lea.hbm %s1, %s122
      %s124 = scalar_lea.vmem [#allocation2], 4
      %s125 = scalar_lea.sflag [#allocation4], 4
      %s127 = sshll.u32 %s124, 4
      %s128 = int_to_ptr.vmem [resolvable:$true] %s127
      %130 = dma.hbm_to_vmem [thread:$0]  %s123, 32, %s128, %s125, 128, 128, 1
      %s131 = sld [smem:[#allocation6 + $0x5]]
      %s132 = sshrl.u32 %s131, 3
      %s133 = sand.u32 %s131, 7
      %s134 = smul.u32 %s132, 16
      %s135 = sadd.s32 %s133, %s134
      %s136 = smul.addr %s135, 16
      %s137 = scalar_lea.hbm %s1, %s136
      %s138 = scalar_lea.vmem [#allocation2], 5
      %s139 = scalar_lea.sflag [#allocation4], 5
      %s141 = sshll.u32 %s138, 4
      %s142 = int_to_ptr.vmem [resolvable:$true] %s141
      %144 = dma.hbm_to_vmem [thread:$0]  %s137, 32, %s142, %s139, 128, 128, 1
      %s145 = sld [smem:[#allocation6 + $0x6]]
      %s146 = sshrl.u32 %s145, 3
      %s147 = sand.u32 %s145, 7
      %s148 = smul.u32 %s146, 16
      %s149 = sadd.s32 %s147, %s148
      %s150 = smul.addr %s149, 16
      %s151 = scalar_lea.hbm %s1, %s150
      %s152 = scalar_lea.vmem [#allocation2], 6
      %s153 = scalar_lea.sflag [#allocation4], 6
      %s155 = sshll.u32 %s152, 4
      %s156 = int_to_ptr.vmem [resolvable:$true] %s155
      %158 = dma.hbm_to_vmem [thread:$0]  %s151, 32, %s156, %s153, 128, 128, 1
      %s159 = sld [smem:[#allocation6 + $0x7]]
      %s160 = sshrl.u32 %s159, 3
      %s161 = sand.u32 %s159, 7
      %s162 = smul.u32 %s160, 16
      %s163 = sadd.s32 %s161, %s162
      %s164 = smul.addr %s163, 16
      %s165 = scalar_lea.hbm %s1, %s164
      %s166 = scalar_lea.vmem [#allocation2], 7
      %s167 = scalar_lea.sflag [#allocation4], 7
      %s169 = sshll.u32 %s166, 4
      %s170 = int_to_ptr.vmem [resolvable:$true] %s169
      %172 = dma.hbm_to_vmem [thread:$0]  %s165, 32, %s170, %s167, 128, 128, 1
      %s173 = smul.u32 1, 2
      %s174 = sshll.u32 %s173, 4
      %175 = dma.done [#allocation4], %s174
      %s176 = sshll.u32 %s173, 4
      %177 = dma.done %s83, %s176
      %s178 = sshll.u32 %s173, 4
      %179 = dma.done %s97, %s178
      %s180 = sshll.u32 %s173, 4
      %181 = dma.done %s111, %s180
      %s182 = sshll.u32 %s173, 4
      %183 = dma.done %s125, %s182
      %s184 = sshll.u32 %s173, 4
      %185 = dma.done %s139, %s184
      %s186 = sshll.u32 %s173, 4
      %187 = dma.done %s153, %s186
      %s188 = sshll.u32 %s173, 4
      %189 = dma.done %s167, %s188
      %v190 = vld [vmem:[#allocation2] sm:$0xff]
      %v191 = vld [vmem:[#allocation2 + $0x8] sm:$0xff]
      %v192 = vpack.c.bf16 %v190, %v190
      %v193 = vpack.c.bf16 %v191, %v191
      %v196 = vunpack.c.l.b16 %v192
      %v197 = vunpack.c.l.b16 %v193
      %v198 = vpack.c.b16 %v197, %v196
      %200 = vst [vmem:[#allocation3] sm:$0xff] %v198
    $region17: #{tpu_custom_call.1} parent=1 // pred_fallthru
      _
    %v201 = vld [vmem:[#allocation3] sm:$0xff]
    %v202 = vld [vmem:[#allocation7] sm:$0xff]
    %v203 = vld [vmem:[#allocation7 + $0x8] sm:$0xff]
    %v204 = vld [vmem:[#allocation7 + $0x10] sm:$0xff]
    %v205 = vld [vmem:[#allocation7 + $0x18] sm:$0xff]
    %v206 = vld [vmem:[#allocation7 + $0x20] sm:$0xff]
    %v207 = vld [vmem:[#allocation7 + $0x28] sm:$0xff]
    %v208 = vld [vmem:[#allocation7 + $0x30] sm:$0xff]
    %v209 = vld [vmem:[#allocation7 + $0x38] sm:$0xff]
    %v210 = vld [vmem:[#allocation7 + $0x40] sm:$0xff]
    %v211 = vld [vmem:[#allocation7 + $0x48] sm:$0xff]
    %v212 = vld [vmem:[#allocation7 + $0x50] sm:$0xff]
    %v213 = vld [vmem:[#allocation7 + $0x58] sm:$0xff]
    %v214 = vld [vmem:[#allocation7 + $0x60] sm:$0xff]
    %v215 = vld [vmem:[#allocation7 + $0x68] sm:$0xff]
    %v216 = vld [vmem:[#allocation7 + $0x70] sm:$0xff]
    %v217 = vld [vmem:[#allocation7 + $0x78] sm:$0xff]
    %v218 = vld [vmem:[#allocation7 + $0x80] sm:$0xff]
    %v219 = vld [vmem:[#allocation7 + $0x88] sm:$0xff]
    %v220 = vld [vmem:[#allocation7 + $0x90] sm:$0xff]
    %v221 = vld [vmem:[#allocation7 + $0x98] sm:$0xff]
    %v222 = vld [vmem:[#allocation7 + $0xa0] sm:$0xff]
    %v223 = vld [vmem:[#allocation7 + $0xa8] sm:$0xff]
    %v224 = vld [vmem:[#allocation7 + $0xb0] sm:$0xff]
    %v225 = vld [vmem:[#allocation7 + $0xb8] sm:$0xff]
    %v226 = vld [vmem:[#allocation7 + $0xc0] sm:$0xff]
    %v227 = vld [vmem:[#allocation7 + $0xc8] sm:$0xff]
    %v228 = vld [vmem:[#allocation7 + $0xd0] sm:$0xff]
    %v229 = vld [vmem:[#allocation7 + $0xd8] sm:$0xff]
    %v230 = vld [vmem:[#allocation7 + $0xe0] sm:$0xff]
    %v231 = vld [vmem:[#allocation7 + $0xe8] sm:$0xff]
    %v232 = vld [vmem:[#allocation7 + $0xf0] sm:$0xff]
    %v233 = vld [vmem:[#allocation7 + $0xf8] sm:$0xff]
    %v234 = vld [vmem:[#allocation7 + $0x100] sm:$0xff]
    %v235 = vld [vmem:[#allocation7 + $0x108] sm:$0xff]
    %v236 = vld [vmem:[#allocation7 + $0x110] sm:$0xff]
    %v237 = vld [vmem:[#allocation7 + $0x118] sm:$0xff]
    %v238 = vld [vmem:[#allocation7 + $0x120] sm:$0xff]
    %v239 = vld [vmem:[#allocation7 + $0x128] sm:$0xff]
    %v240 = vld [vmem:[#allocation7 + $0x130] sm:$0xff]
    %v241 = vld [vmem:[#allocation7 + $0x138] sm:$0xff]
    %v242 = vld [vmem:[#allocation7 + $0x140] sm:$0xff]
    %v243 = vld [vmem:[#allocation7 + $0x148] sm:$0xff]
    %v244 = vld [vmem:[#allocation7 + $0x150] sm:$0xff]
    %v245 = vld [vmem:[#allocation7 + $0x158] sm:$0xff]
    %v246 = vld [vmem:[#allocation7 + $0x160] sm:$0xff]
    %v247 = vld [vmem:[#allocation7 + $0x168] sm:$0xff]
    %v248 = vld [vmem:[#allocation7 + $0x170] sm:$0xff]
    %v249 = vld [vmem:[#allocation7 + $0x178] sm:$0xff]
    %v250 = vld [vmem:[#allocation7 + $0x180] sm:$0xff]
    %v251 = vld [vmem:[#allocation7 + $0x188] sm:$0xff]
    %v252 = vld [vmem:[#allocation7 + $0x190] sm:$0xff]
    %v253 = vld [vmem:[#allocation7 + $0x198] sm:$0xff]
    %v254 = vld [vmem:[#allocation7 + $0x1a0] sm:$0xff]
    %v255 = vld [vmem:[#allocation7 + $0x1a8] sm:$0xff]
    %v256 = vld [vmem:[#allocation7 + $0x1b0] sm:$0xff]
    %v257 = vld [vmem:[#allocation7 + $0x1b8] sm:$0xff]
    %v258 = vld [vmem:[#allocation7 + $0x1c0] sm:$0xff]
    %v259 = vld [vmem:[#allocation7 + $0x1c8] sm:$0xff]
    %v260 = vld [vmem:[#allocation7 + $0x1d0] sm:$0xff]
    %v261 = vld [vmem:[#allocation7 + $0x1d8] sm:$0xff]
    %v262 = vld [vmem:[#allocation7 + $0x1e0] sm:$0xff]
    %v263 = vld [vmem:[#allocation7 + $0x1e8] sm:$0xff]
    %v264 = vld [vmem:[#allocation7 + $0x1f0] sm:$0xff]
    %v265 = vld [vmem:[#allocation7 + $0x1f8] sm:$0xff]
    %v266 = vld [vmem:[#allocation7 + $0x200] sm:$0xff]
    %v267 = vld [vmem:[#allocation7 + $0x208] sm:$0xff]
    %v268 = vld [vmem:[#allocation7 + $0x210] sm:$0xff]
    %v269 = vld [vmem:[#allocation7 + $0x218] sm:$0xff]
    %v270 = vld [vmem:[#allocation7 + $0x220] sm:$0xff]
    %v271 = vld [vmem:[#allocation7 + $0x228] sm:$0xff]
    %v272 = vld [vmem:[#allocation7 + $0x230] sm:$0xff]
    %v273 = vld [vmem:[#allocation7 + $0x238] sm:$0xff]
    %v274 = vld [vmem:[#allocation7 + $0x240] sm:$0xff]
    %v275 = vld [vmem:[#allocation7 + $0x248] sm:$0xff]
    %v276 = vld [vmem:[#allocation7 + $0x250] sm:$0xff]
    %v277 = vld [vmem:[#allocation7 + $0x258] sm:$0xff]
    %v278 = vld [vmem:[#allocation7 + $0x260] sm:$0xff]
    %v279 = vld [vmem:[#allocation7 + $0x268] sm:$0xff]
    %v280 = vld [vmem:[#allocation7 + $0x270] sm:$0xff]
    %v281 = vld [vmem:[#allocation7 + $0x278] sm:$0xff]
    %v282 = vld [vmem:[#allocation7 + $0x280] sm:$0xff]
    %v283 = vld [vmem:[#allocation7 + $0x288] sm:$0xff]
    %v284 = vld [vmem:[#allocation7 + $0x290] sm:$0xff]
    %v285 = vld [vmem:[#allocation7 + $0x298] sm:$0xff]
    %v286 = vld [vmem:[#allocation7 + $0x2a0] sm:$0xff]
    %v287 = vld [vmem:[#allocation7 + $0x2a8] sm:$0xff]
    %v288 = vld [vmem:[#allocation7 + $0x2b0] sm:$0xff]
    %v289 = vld [vmem:[#allocation7 + $0x2b8] sm:$0xff]
    %v290 = vld [vmem:[#allocation7 + $0x2c0] sm:$0xff]
    %v291 = vld [vmem:[#allocation7 + $0x2c8] sm:$0xff]
    %v292 = vld [vmem:[#allocation7 + $0x2d0] sm:$0xff]
    %v293 = vld [vmem:[#allocation7 + $0x2d8] sm:$0xff]
    %v294 = vld [vmem:[#allocation7 + $0x2e0] sm:$0xff]
    %v295 = vld [vmem:[#allocation7 + $0x2e8] sm:$0xff]
    %v296 = vld [vmem:[#allocation7 + $0x2f0] sm:$0xff]
    %v297 = vld [vmem:[#allocation7 + $0x2f8] sm:$0xff]
    %v298 = vld [vmem:[#allocation7 + $0x300] sm:$0xff]
    %v299 = vld [vmem:[#allocation7 + $0x308] sm:$0xff]
    %v300 = vld [vmem:[#allocation7 + $0x310] sm:$0xff]
    %v301 = vld [vmem:[#allocation7 + $0x318] sm:$0xff]
    %v302 = vld [vmem:[#allocation7 + $0x320] sm:$0xff]
    %v303 = vld [vmem:[#allocation7 + $0x328] sm:$0xff]
    %v304 = vld [vmem:[#allocation7 + $0x330] sm:$0xff]
    %v305 = vld [vmem:[#allocation7 + $0x338] sm:$0xff]
    %v306 = vld [vmem:[#allocation7 + $0x340] sm:$0xff]
    %v307 = vld [vmem:[#allocation7 + $0x348] sm:$0xff]
    %v308 = vld [vmem:[#allocation7 + $0x350] sm:$0xff]
    %v309 = vld [vmem:[#allocation7 + $0x358] sm:$0xff]
    %v310 = vld [vmem:[#allocation7 + $0x360] sm:$0xff]
    %v311 = vld [vmem:[#allocation7 + $0x368] sm:$0xff]
    %v312 = vld [vmem:[#allocation7 + $0x370] sm:$0xff]
    %v313 = vld [vmem:[#allocation7 + $0x378] sm:$0xff]
    %v314 = vld [vmem:[#allocation7 + $0x380] sm:$0xff]
    %v315 = vld [vmem:[#allocation7 + $0x388] sm:$0xff]
    %v316 = vld [vmem:[#allocation7 + $0x390] sm:$0xff]
    %v317 = vld [vmem:[#allocation7 + $0x398] sm:$0xff]
    %v318 = vld [vmem:[#allocation7 + $0x3a0] sm:$0xff]
    %v319 = vld [vmem:[#allocation7 + $0x3a8] sm:$0xff]
    %v320 = vld [vmem:[#allocation7 + $0x3b0] sm:$0xff]
    %v321 = vld [vmem:[#allocation7 + $0x3b8] sm:$0xff]
    %v322 = vld [vmem:[#allocation7 + $0x3c0] sm:$0xff]
    %v323 = vld [vmem:[#allocation7 + $0x3c8] sm:$0xff]
    %v324 = vld [vmem:[#allocation7 + $0x3d0] sm:$0xff]
    %v325 = vld [vmem:[#allocation7 + $0x3d8] sm:$0xff]
    %v326 = vld [vmem:[#allocation7 + $0x3e0] sm:$0xff]
    %v327 = vld [vmem:[#allocation7 + $0x3e8] sm:$0xff]
    %v328 = vld [vmem:[#allocation7 + $0x3f0] sm:$0xff]
    %v329 = vld [vmem:[#allocation7 + $0x3f8] sm:$0xff]
    %v330 = vld [vmem:[%s54] sm:$0xff]
    %v332 = vlaneseq
    %v333 = vshrl.u32 %v332, 7
    %v334 = vsub.s32 0, %v333
    %v335 = vrot.slane %v330, %v334
    %v336 = vlaneseq
    %v337 = vshrl.u32 %v336, 7
    %v338 = vsub.s32 1, %v337
    %v339 = vrot.slane %v330, %v338
    %v340 = vlaneseq
    %v341 = vshrl.u32 %v340, 7
    %v342 = vsub.s32 2, %v341
    %v343 = vrot.slane %v330, %v342
    %v344 = vlaneseq
    %v345 = vshrl.u32 %v344, 7
    %v346 = vsub.s32 3, %v345
    %v347 = vrot.slane %v330, %v346
    %v348 = vlaneseq
    %v349 = vshrl.u32 %v348, 7
    %v350 = vsub.s32 4, %v349
    %v351 = vrot.slane %v330, %v350
    %v352 = vlaneseq
    %v353 = vshrl.u32 %v352, 7
    %v354 = vsub.s32 5, %v353
    %v355 = vrot.slane %v330, %v354
    %v356 = vlaneseq
    %v357 = vshrl.u32 %v356, 7
    %v358 = vsub.s32 6, %v357
    %v359 = vrot.slane %v330, %v358
    %v360 = vlaneseq
    %v361 = vshrl.u32 %v360, 7
    %v362 = vsub.s32 7, %v361
    %v363 = vrot.slane %v330, %v362
    %v373 = vunpack.c.l.b16 %v201
    %v374 = vunpack.c.h.b16 %v201
    %v375 = vpack.c.b16 %v373, %v373
    %v376 = vpack.c.b16 %v374, %v374
    %v507 = vunpack.c.l.b16 %v202
    %v508 = vunpack.c.h.b16 %v202
    %v509 = vunpack.c.l.b16 %v203
    %v510 = vunpack.c.h.b16 %v203
    %v511 = vunpack.c.l.b16 %v204
    %v512 = vunpack.c.h.b16 %v204
    %v513 = vunpack.c.l.b16 %v205
    %v514 = vunpack.c.h.b16 %v205
    %v515 = vunpack.c.l.b16 %v206
    %v516 = vunpack.c.h.b16 %v206
    %v517 = vunpack.c.l.b16 %v207
    %v518 = vunpack.c.h.b16 %v207
    %v519 = vunpack.c.l.b16 %v208
    %v520 = vunpack.c.h.b16 %v208
    %v521 = vunpack.c.l.b16 %v209
    %v522 = vunpack.c.h.b16 %v209
    %v523 = vunpack.c.l.b16 %v210
    %v524 = vunpack.c.h.b16 %v210
    %v525 = vunpack.c.l.b16 %v211
    %v526 = vunpack.c.h.b16 %v211
    %v527 = vunpack.c.l.b16 %v212
    %v528 = vunpack.c.h.b16 %v212
    %v529 = vunpack.c.l.b16 %v213
    %v530 = vunpack.c.h.b16 %v213
    %v531 = vunpack.c.l.b16 %v214
    %v532 = vunpack.c.h.b16 %v214
    %v533 = vunpack.c.l.b16 %v215
    %v534 = vunpack.c.h.b16 %v215
    %v535 = vunpack.c.l.b16 %v216
    %v536 = vunpack.c.h.b16 %v216
    %v537 = vunpack.c.l.b16 %v217
    %v538 = vunpack.c.h.b16 %v217
    %v539 = vunpack.c.l.b16 %v218
    %v540 = vunpack.c.h.b16 %v218
    %v541 = vunpack.c.l.b16 %v219
    %v542 = vunpack.c.h.b16 %v219
    %v543 = vunpack.c.l.b16 %v220
    %v544 = vunpack.c.h.b16 %v220
    %v545 = vunpack.c.l.b16 %v221
    %v546 = vunpack.c.h.b16 %v221
    %v547 = vunpack.c.l.b16 %v222
    %v548 = vunpack.c.h.b16 %v222
    %v549 = vunpack.c.l.b16 %v223
    %v550 = vunpack.c.h.b16 %v223
    %v551 = vunpack.c.l.b16 %v224
    %v552 = vunpack.c.h.b16 %v224
    %v553 = vunpack.c.l.b16 %v225
    %v554 = vunpack.c.h.b16 %v225
    %v555 = vunpack.c.l.b16 %v226
    %v556 = vunpack.c.h.b16 %v226
    %v557 = vunpack.c.l.b16 %v227
    %v558 = vunpack.c.h.b16 %v227
    %v559 = vunpack.c.l.b16 %v228
    %v560 = vunpack.c.h.b16 %v228
    %v561 = vunpack.c.l.b16 %v229
    %v562 = vunpack.c.h.b16 %v229
    %v563 = vunpack.c.l.b16 %v230
    %v564 = vunpack.c.h.b16 %v230
    %v565 = vunpack.c.l.b16 %v231
    %v566 = vunpack.c.h.b16 %v231
    %v567 = vunpack.c.l.b16 %v232
    %v568 = vunpack.c.h.b16 %v232
    %v569 = vunpack.c.l.b16 %v233
    %v570 = vunpack.c.h.b16 %v233
    %v571 = vunpack.c.l.b16 %v234
    %v572 = vunpack.c.h.b16 %v234
    %v573 = vunpack.c.l.b16 %v235
    %v574 = vunpack.c.h.b16 %v235
    %v575 = vunpack.c.l.b16 %v236
    %v576 = vunpack.c.h.b16 %v236
    %v577 = vunpack.c.l.b16 %v237
    %v578 = vunpack.c.h.b16 %v237
    %v579 = vunpack.c.l.b16 %v238
    %v580 = vunpack.c.h.b16 %v238
    %v581 = vunpack.c.l.b16 %v239
    %v582 = vunpack.c.h.b16 %v239
    %v583 = vunpack.c.l.b16 %v240
    %v584 = vunpack.c.h.b16 %v240
    %v585 = vunpack.c.l.b16 %v241
    %v586 = vunpack.c.h.b16 %v241
    %v587 = vunpack.c.l.b16 %v242
    %v588 = vunpack.c.h.b16 %v242
    %v589 = vunpack.c.l.b16 %v243
    %v590 = vunpack.c.h.b16 %v243
    %v591 = vunpack.c.l.b16 %v244
    %v592 = vunpack.c.h.b16 %v244
    %v593 = vunpack.c.l.b16 %v245
    %v594 = vunpack.c.h.b16 %v245
    %v595 = vunpack.c.l.b16 %v246
    %v596 = vunpack.c.h.b16 %v246
    %v597 = vunpack.c.l.b16 %v247
    %v598 = vunpack.c.h.b16 %v247
    %v599 = vunpack.c.l.b16 %v248
    %v600 = vunpack.c.h.b16 %v248
    %v601 = vunpack.c.l.b16 %v249
    %v602 = vunpack.c.h.b16 %v249
    %v603 = vunpack.c.l.b16 %v250
    %v604 = vunpack.c.h.b16 %v250
    %v605 = vunpack.c.l.b16 %v251
    %v606 = vunpack.c.h.b16 %v251
    %v607 = vunpack.c.l.b16 %v252
    %v608 = vunpack.c.h.b16 %v252
    %v609 = vunpack.c.l.b16 %v253
    %v610 = vunpack.c.h.b16 %v253
    %v611 = vunpack.c.l.b16 %v254
    %v612 = vunpack.c.h.b16 %v254
    %v613 = vunpack.c.l.b16 %v255
    %v614 = vunpack.c.h.b16 %v255
    %v615 = vunpack.c.l.b16 %v256
    %v616 = vunpack.c.h.b16 %v256
    %v617 = vunpack.c.l.b16 %v257
    %v618 = vunpack.c.h.b16 %v257
    %v619 = vunpack.c.l.b16 %v258
    %v620 = vunpack.c.h.b16 %v258
    %v621 = vunpack.c.l.b16 %v259
    %v622 = vunpack.c.h.b16 %v259
    %v623 = vunpack.c.l.b16 %v260
    %v624 = vunpack.c.h.b16 %v260
    %v625 = vunpack.c.l.b16 %v261
    %v626 = vunpack.c.h.b16 %v261
    %v627 = vunpack.c.l.b16 %v262
    %v628 = vunpack.c.h.b16 %v262
    %v629 = vunpack.c.l.b16 %v263
    %v630 = vunpack.c.h.b16 %v263
    %v631 = vunpack.c.l.b16 %v264
    %v632 = vunpack.c.h.b16 %v264
    %v633 = vunpack.c.l.b16 %v265
    %v634 = vunpack.c.h.b16 %v265
    %v635 = vunpack.c.l.b16 %v266
    %v636 = vunpack.c.h.b16 %v266
    %v637 = vunpack.c.l.b16 %v267
    %v638 = vunpack.c.h.b16 %v267
    %v639 = vunpack.c.l.b16 %v268
    %v640 = vunpack.c.h.b16 %v268
    %v641 = vunpack.c.l.b16 %v269
    %v642 = vunpack.c.h.b16 %v269
    %v643 = vunpack.c.l.b16 %v270
    %v644 = vunpack.c.h.b16 %v270
    %v645 = vunpack.c.l.b16 %v271
    %v646 = vunpack.c.h.b16 %v271
    %v647 = vunpack.c.l.b16 %v272
    %v648 = vunpack.c.h.b16 %v272
    %v649 = vunpack.c.l.b16 %v273
    %v650 = vunpack.c.h.b16 %v273
    %v651 = vunpack.c.l.b16 %v274
    %v652 = vunpack.c.h.b16 %v274
    %v653 = vunpack.c.l.b16 %v275
    %v654 = vunpack.c.h.b16 %v275
    %v655 = vunpack.c.l.b16 %v276
    %v656 = vunpack.c.h.b16 %v276
    %v657 = vunpack.c.l.b16 %v277
    %v658 = vunpack.c.h.b16 %v277
    %v659 = vunpack.c.l.b16 %v278
    %v660 = vunpack.c.h.b16 %v278
    %v661 = vunpack.c.l.b16 %v279
    %v662 = vunpack.c.h.b16 %v279
    %v663 = vunpack.c.l.b16 %v280
    %v664 = vunpack.c.h.b16 %v280
    %v665 = vunpack.c.l.b16 %v281
    %v666 = vunpack.c.h.b16 %v281
    %v667 = vunpack.c.l.b16 %v282
    %v668 = vunpack.c.h.b16 %v282
    %v669 = vunpack.c.l.b16 %v283
    %v670 = vunpack.c.h.b16 %v283
    %v671 = vunpack.c.l.b16 %v284
    %v672 = vunpack.c.h.b16 %v284
    %v673 = vunpack.c.l.b16 %v285
    %v674 = vunpack.c.h.b16 %v285
    %v675 = vunpack.c.l.b16 %v286
    %v676 = vunpack.c.h.b16 %v286
    %v677 = vunpack.c.l.b16 %v287
    %v678 = vunpack.c.h.b16 %v287
    %v679 = vunpack.c.l.b16 %v288
    %v680 = vunpack.c.h.b16 %v288
    %v681 = vunpack.c.l.b16 %v289
    %v682 = vunpack.c.h.b16 %v289
    %v683 = vunpack.c.l.b16 %v290
    %v684 = vunpack.c.h.b16 %v290
    %v685 = vunpack.c.l.b16 %v291
    %v686 = vunpack.c.h.b16 %v291
    %v687 = vunpack.c.l.b16 %v292
    %v688 = vunpack.c.h.b16 %v292
    %v689 = vunpack.c.l.b16 %v293
    %v690 = vunpack.c.h.b16 %v293
    %v691 = vunpack.c.l.b16 %v294
    %v692 = vunpack.c.h.b16 %v294
    %v693 = vunpack.c.l.b16 %v295
    %v694 = vunpack.c.h.b16 %v295
    %v695 = vunpack.c.l.b16 %v296
    %v696 = vunpack.c.h.b16 %v296
    %v697 = vunpack.c.l.b16 %v297
    %v698 = vunpack.c.h.b16 %v297
    %v699 = vunpack.c.l.b16 %v298
    %v700 = vunpack.c.h.b16 %v298
    %v701 = vunpack.c.l.b16 %v299
    %v702 = vunpack.c.h.b16 %v299
    %v703 = vunpack.c.l.b16 %v300
    %v704 = vunpack.c.h.b16 %v300
    %v705 = vunpack.c.l.b16 %v301
    %v706 = vunpack.c.h.b16 %v301
    %v707 = vunpack.c.l.b16 %v302
    %v708 = vunpack.c.h.b16 %v302
    %v709 = vunpack.c.l.b16 %v303
    %v710 = vunpack.c.h.b16 %v303
    %v711 = vunpack.c.l.b16 %v304
    %v712 = vunpack.c.h.b16 %v304
    %v713 = vunpack.c.l.b16 %v305
    %v714 = vunpack.c.h.b16 %v305
    %v715 = vunpack.c.l.b16 %v306
    %v716 = vunpack.c.h.b16 %v306
    %v717 = vunpack.c.l.b16 %v307
    %v718 = vunpack.c.h.b16 %v307
    %v719 = vunpack.c.l.b16 %v308
    %v720 = vunpack.c.h.b16 %v308
    %v721 = vunpack.c.l.b16 %v309
    %v722 = vunpack.c.h.b16 %v309
    %v723 = vunpack.c.l.b16 %v310
    %v724 = vunpack.c.h.b16 %v310
    %v725 = vunpack.c.l.b16 %v311
    %v726 = vunpack.c.h.b16 %v311
    %v727 = vunpack.c.l.b16 %v312
    %v728 = vunpack.c.h.b16 %v312
    %v729 = vunpack.c.l.b16 %v313
    %v730 = vunpack.c.h.b16 %v313
    %v731 = vunpack.c.l.b16 %v314
    %v732 = vunpack.c.h.b16 %v314
    %v733 = vunpack.c.l.b16 %v315
    %v734 = vunpack.c.h.b16 %v315
    %v735 = vunpack.c.l.b16 %v316
    %v736 = vunpack.c.h.b16 %v316
    %v737 = vunpack.c.l.b16 %v317
    %v738 = vunpack.c.h.b16 %v317
    %v739 = vunpack.c.l.b16 %v318
    %v740 = vunpack.c.h.b16 %v318
    %v741 = vunpack.c.l.b16 %v319
    %v742 = vunpack.c.h.b16 %v319
    %v743 = vunpack.c.l.b16 %v320
    %v744 = vunpack.c.h.b16 %v320
    %v745 = vunpack.c.l.b16 %v321
    %v746 = vunpack.c.h.b16 %v321
    %v747 = vunpack.c.l.b16 %v322
    %v748 = vunpack.c.h.b16 %v322
    %v749 = vunpack.c.l.b16 %v323
    %v750 = vunpack.c.h.b16 %v323
    %v751 = vunpack.c.l.b16 %v324
    %v752 = vunpack.c.h.b16 %v324
    %v753 = vunpack.c.l.b16 %v325
    %v754 = vunpack.c.h.b16 %v325
    %v755 = vunpack.c.l.b16 %v326
    %v756 = vunpack.c.h.b16 %v326
    %v757 = vunpack.c.l.b16 %v327
    %v758 = vunpack.c.h.b16 %v327
    %v759 = vunpack.c.l.b16 %v328
    %v760 = vunpack.c.h.b16 %v328
    %v761 = vunpack.c.l.b16 %v329
    %v762 = vunpack.c.h.b16 %v329
    %v763 = vpack.c.b16 %v515, %v507
    %v764 = vpack.c.b16 %v516, %v508
    %v765 = vpack.c.b16 %v517, %v509
    %v766 = vpack.c.b16 %v518, %v510
    %v767 = vpack.c.b16 %v519, %v511
    %v768 = vpack.c.b16 %v520, %v512
    %v769 = vpack.c.b16 %v521, %v513
    %v770 = vpack.c.b16 %v522, %v514
    %v771 = vpack.c.b16 %v531, %v523
    %v772 = vpack.c.b16 %v532, %v524
    %v773 = vpack.c.b16 %v533, %v525
    %v774 = vpack.c.b16 %v534, %v526
    %v775 = vpack.c.b16 %v535, %v527
    %v776 = vpack.c.b16 %v536, %v528
    %v777 = vpack.c.b16 %v537, %v529
    %v778 = vpack.c.b16 %v538, %v530
    %v779 = vpack.c.b16 %v547, %v539
    %v780 = vpack.c.b16 %v548, %v540
    %v781 = vpack.c.b16 %v549, %v541
    %v782 = vpack.c.b16 %v550, %v542
    %v783 = vpack.c.b16 %v551, %v543
    %v784 = vpack.c.b16 %v552, %v544
    %v785 = vpack.c.b16 %v553, %v545
    %v786 = vpack.c.b16 %v554, %v546
    %v787 = vpack.c.b16 %v563, %v555
    %v788 = vpack.c.b16 %v564, %v556
    %v789 = vpack.c.b16 %v565, %v557
    %v790 = vpack.c.b16 %v566, %v558
    %v791 = vpack.c.b16 %v567, %v559
    %v792 = vpack.c.b16 %v568, %v560
    %v793 = vpack.c.b16 %v569, %v561
    %v794 = vpack.c.b16 %v570, %v562
    %v795 = vpack.c.b16 %v579, %v571
    %v796 = vpack.c.b16 %v580, %v572
    %v797 = vpack.c.b16 %v581, %v573
    %v798 = vpack.c.b16 %v582, %v574
    %v799 = vpack.c.b16 %v583, %v575
    %v800 = vpack.c.b16 %v584, %v576
    %v801 = vpack.c.b16 %v585, %v577
    %v802 = vpack.c.b16 %v586, %v578
    %v803 = vpack.c.b16 %v595, %v587
    %v804 = vpack.c.b16 %v596, %v588
    %v805 = vpack.c.b16 %v597, %v589
    %v806 = vpack.c.b16 %v598, %v590
    %v807 = vpack.c.b16 %v599, %v591
    %v808 = vpack.c.b16 %v600, %v592
    %v809 = vpack.c.b16 %v601, %v593
    %v810 = vpack.c.b16 %v602, %v594
    %v811 = vpack.c.b16 %v611, %v603
    %v812 = vpack.c.b16 %v612, %v604
    %v813 = vpack.c.b16 %v613, %v605
    %v814 = vpack.c.b16 %v614, %v606
    %v815 = vpack.c.b16 %v615, %v607
    %v816 = vpack.c.b16 %v616, %v608
    %v817 = vpack.c.b16 %v617, %v609
    %v818 = vpack.c.b16 %v618, %v610
    %v819 = vpack.c.b16 %v627, %v619
    %v820 = vpack.c.b16 %v628, %v620
    %v821 = vpack.c.b16 %v629, %v621
    %v822 = vpack.c.b16 %v630, %v622
    %v823 = vpack.c.b16 %v631, %v623
    %v824 = vpack.c.b16 %v632, %v624
    %v825 = vpack.c.b16 %v633, %v625
    %v826 = vpack.c.b16 %v634, %v626
    %v827 = vpack.c.b16 %v643, %v635
    %v828 = vpack.c.b16 %v644, %v636
    %v829 = vpack.c.b16 %v645, %v637
    %v830 = vpack.c.b16 %v646, %v638
    %v831 = vpack.c.b16 %v647, %v639
    %v832 = vpack.c.b16 %v648, %v640
    %v833 = vpack.c.b16 %v649, %v641
    %v834 = vpack.c.b16 %v650, %v642
    %v835 = vpack.c.b16 %v659, %v651
    %v836 = vpack.c.b16 %v660, %v652
    %v837 = vpack.c.b16 %v661, %v653
    %v838 = vpack.c.b16 %v662, %v654
    %v839 = vpack.c.b16 %v663, %v655
    %v840 = vpack.c.b16 %v664, %v656
    %v841 = vpack.c.b16 %v665, %v657
    %v842 = vpack.c.b16 %v666, %v658
    %v843 = vpack.c.b16 %v675, %v667
    %v844 = vpack.c.b16 %v676, %v668
    %v845 = vpack.c.b16 %v677, %v669
    %v846 = vpack.c.b16 %v678, %v670
    %v847 = vpack.c.b16 %v679, %v671
    %v848 = vpack.c.b16 %v680, %v672
    %v849 = vpack.c.b16 %v681, %v673
    %v850 = vpack.c.b16 %v682, %v674
    %v851 = vpack.c.b16 %v691, %v683
    %v852 = vpack.c.b16 %v692, %v684
    %v853 = vpack.c.b16 %v693, %v685
    %v854 = vpack.c.b16 %v694, %v686
    %v855 = vpack.c.b16 %v695, %v687
    %v856 = vpack.c.b16 %v696, %v688
    %v857 = vpack.c.b16 %v697, %v689
    %v858 = vpack.c.b16 %v698, %v690
    %v859 = vpack.c.b16 %v707, %v699
    %v860 = vpack.c.b16 %v708, %v700
    %v861 = vpack.c.b16 %v709, %v701
    %v862 = vpack.c.b16 %v710, %v702
    %v863 = vpack.c.b16 %v711, %v703
    %v864 = vpack.c.b16 %v712, %v704
    %v865 = vpack.c.b16 %v713, %v705
    %v866 = vpack.c.b16 %v714, %v706
    %v867 = vpack.c.b16 %v723, %v715
    %v868 = vpack.c.b16 %v724, %v716
    %v869 = vpack.c.b16 %v725, %v717
    %v870 = vpack.c.b16 %v726, %v718
    %v871 = vpack.c.b16 %v727, %v719
    %v872 = vpack.c.b16 %v728, %v720
    %v873 = vpack.c.b16 %v729, %v721
    %v874 = vpack.c.b16 %v730, %v722
    %v875 = vpack.c.b16 %v739, %v731
    %v876 = vpack.c.b16 %v740, %v732
    %v877 = vpack.c.b16 %v741, %v733
    %v878 = vpack.c.b16 %v742, %v734
    %v879 = vpack.c.b16 %v743, %v735
    %v880 = vpack.c.b16 %v744, %v736
    %v881 = vpack.c.b16 %v745, %v737
    %v882 = vpack.c.b16 %v746, %v738
    %v883 = vpack.c.b16 %v755, %v747
    %v884 = vpack.c.b16 %v756, %v748
    %v885 = vpack.c.b16 %v757, %v749
    %v886 = vpack.c.b16 %v758, %v750
    %v887 = vpack.c.b16 %v759, %v751
    %v888 = vpack.c.b16 %v760, %v752
    %v889 = vpack.c.b16 %v761, %v753
    %v890 = vpack.c.b16 %v762, %v754
    %1019 = vmatprep.subr.bf16.mxu0 %v764
    %1020 = vmatpush1.bf16.msra.mxu0 %v763
    %1021 = vmatprep.subr.bf16.mxu0 %v772
    %1022 = vmatpush1.bf16.msra.mxu0 %v771
    %1023 = vmatprep.subr.bf16.mxu0 %v780
    %1024 = vmatpush1.bf16.msra.mxu0 %v779
    %1025 = vmatprep.subr.bf16.mxu0 %v788
    %1026 = vmatpush1.bf16.msra.mxu0 %v787
    %1027 = vmatprep.subr.bf16.mxu0 %v796
    %1028 = vmatpush1.bf16.msra.mxu0 %v795
    %1029 = vmatprep.subr.bf16.mxu0 %v804
    %1030 = vmatpush1.bf16.msra.mxu0 %v803
    %1031 = vmatprep.subr.bf16.mxu0 %v812
    %1032 = vmatpush1.bf16.msra.mxu0 %v811
    %1033 = vmatprep.subr.bf16.mxu0 %v820
    %1034 = vmatpush1.bf16.msra.mxu0 %v819
    %1035 = vmatprep.subr.bf16.mxu0 %v828
    %1036 = vmatpush1.bf16.msra.mxu0 %v827
    %1037 = vmatprep.subr.bf16.mxu0 %v836
    %1038 = vmatpush1.bf16.msra.mxu0 %v835
    %1039 = vmatprep.subr.bf16.mxu0 %v844
    %1040 = vmatpush1.bf16.msra.mxu0 %v843
    %1041 = vmatprep.subr.bf16.mxu0 %v852
    %1042 = vmatpush1.bf16.msra.mxu0 %v851
    %1043 = vmatprep.subr.bf16.mxu0 %v860
    %1044 = vmatpush1.bf16.msra.mxu0 %v859
    %1045 = vmatprep.subr.bf16.mxu0 %v868
    %1046 = vmatpush1.bf16.msra.mxu0 %v867
    %1047 = vmatprep.subr.bf16.mxu0 %v876
    %1048 = vmatpush1.bf16.msra.mxu0 %v875
    %1049 = vmatprep.subr.bf16.mxu0 %v884
    %1050 = vmatpush1.bf16.msra.mxu0 %v883
    %1051 = vmatprep.mubr.bf16.mxu0 %v376
    %1052 = vmatmul.mubr.bf16.gmra.mrb[0].mxu0 %v375
    %v1053 = vpop.f32.mrb[0].mxu0
    %v1054 = vadd.f32 %v335, %v1053
    %v1055 = vpop.f32.mrb[0].mxu0
    %v1056 = vadd.f32 %v339, %v1055
    %v1057 = vpop.f32.mrb[0].mxu0
    %v1058 = vpop.f32.mrb[0].mxu0
    %1059 = vdwg.mxu0
    %1060 = vmatprep.subr.bf16.mxu0 %v766
    %1061 = vmatpush1.bf16.msra.mxu0 %v765
    %1062 = vmatprep.subr.bf16.mxu0 %v774
    %1063 = vmatpush1.bf16.msra.mxu0 %v773
    %1064 = vmatprep.subr.bf16.mxu0 %v782
    %1065 = vmatpush1.bf16.msra.mxu0 %v781
    %1066 = vmatprep.subr.bf16.mxu0 %v790
    %1067 = vmatpush1.bf16.msra.mxu0 %v789
    %1068 = vmatprep.subr.bf16.mxu0 %v798
    %1069 = vmatpush1.bf16.msra.mxu0 %v797
    %1070 = vmatprep.subr.bf16.mxu0 %v806
    %1071 = vmatpush1.bf16.msra.mxu0 %v805
    %1072 = vmatprep.subr.bf16.mxu0 %v814
    %1073 = vmatpush1.bf16.msra.mxu0 %v813
    %1074 = vmatprep.subr.bf16.mxu0 %v822
    %1075 = vmatpush1.bf16.msra.mxu0 %v821
    %1076 = vmatprep.subr.bf16.mxu0 %v830
    %1077 = vmatpush1.bf16.msra.mxu0 %v829
    %1078 = vmatprep.subr.bf16.mxu0 %v838
    %1079 = vmatpush1.bf16.msra.mxu0 %v837
    %1080 = vmatprep.subr.bf16.mxu0 %v846
    %1081 = vmatpush1.bf16.msra.mxu0 %v845
    %1082 = vmatprep.subr.bf16.mxu0 %v854
    %1083 = vmatpush1.bf16.msra.mxu0 %v853
    %1084 = vmatprep.subr.bf16.mxu0 %v862
    %1085 = vmatpush1.bf16.msra.mxu0 %v861
    %1086 = vmatprep.subr.bf16.mxu0 %v870
    %1087 = vmatpush1.bf16.msra.mxu0 %v869
    %1088 = vmatprep.subr.bf16.mxu0 %v878
    %1089 = vmatpush1.bf16.msra.mxu0 %v877
    %1090 = vmatprep.subr.bf16.mxu0 %v886
    %1091 = vmatpush1.bf16.msra.mxu0 %v885
    %1092 = vmatprep.mubr.bf16.mxu0 %v376
    %1093 = vmatmul.mubr.bf16.gmra.mrb[0].mxu0 %v375
    %v1094 = vpop.f32.mrb[0].mxu0
    %v1095 = vadd.f32 %v343, %v1094
    %v1096 = vpop.f32.mrb[0].mxu0
    %v1097 = vadd.f32 %v347, %v1096
    %v1098 = vpop.f32.mrb[0].mxu0
    %v1099 = vpop.f32.mrb[0].mxu0
    %1100 = vdwg.mxu0
    %1101 = vmatprep.subr.bf16.mxu0 %v768
    %1102 = vmatpush1.bf16.msra.mxu0 %v767
    %1103 = vmatprep.subr.bf16.mxu0 %v776
    %1104 = vmatpush1.bf16.msra.mxu0 %v775
    %1105 = vmatprep.subr.bf16.mxu0 %v784
    %1106 = vmatpush1.bf16.msra.mxu0 %v783
    %1107 = vmatprep.subr.bf16.mxu0 %v792
    %1108 = vmatpush1.bf16.msra.mxu0 %v791
    %1109 = vmatprep.subr.bf16.mxu0 %v800
    %1110 = vmatpush1.bf16.msra.mxu0 %v799
    %1111 = vmatprep.subr.bf16.mxu0 %v808
    %1112 = vmatpush1.bf16.msra.mxu0 %v807
    %1113 = vmatprep.subr.bf16.mxu0 %v816
    %1114 = vmatpush1.bf16.msra.mxu0 %v815
    %1115 = vmatprep.subr.bf16.mxu0 %v824
    %1116 = vmatpush1.bf16.msra.mxu0 %v823
    %1117 = vmatprep.subr.bf16.mxu0 %v832
    %1118 = vmatpush1.bf16.msra.mxu0 %v831
    %1119 = vmatprep.subr.bf16.mxu0 %v840
    %1120 = vmatpush1.bf16.msra.mxu0 %v839
    %1121 = vmatprep.subr.bf16.mxu0 %v848
    %1122 = vmatpush1.bf16.msra.mxu0 %v847
    %1123 = vmatprep.subr.bf16.mxu0 %v856
    %1124 = vmatpush1.bf16.msra.mxu0 %v855
    %1125 = vmatprep.subr.bf16.mxu0 %v864
    %1126 = vmatpush1.bf16.msra.mxu0 %v863
    %1127 = vmatprep.subr.bf16.mxu0 %v872
    %1128 = vmatpush1.bf16.msra.mxu0 %v871
    %1129 = vmatprep.subr.bf16.mxu0 %v880
    %1130 = vmatpush1.bf16.msra.mxu0 %v879
    %1131 = vmatprep.subr.bf16.mxu0 %v888
    %1132 = vmatpush1.bf16.msra.mxu0 %v887
    %1133 = vmatprep.mubr.bf16.mxu0 %v376
    %1134 = vmatmul.mubr.bf16.gmra.mrb[0].mxu0 %v375
    %v1135 = vpop.f32.mrb[0].mxu0
    %v1136 = vadd.f32 %v351, %v1135
    %v1137 = vpop.f32.mrb[0].mxu0
    %v1138 = vadd.f32 %v355, %v1137
    %v1139 = vpop.f32.mrb[0].mxu0
    %v1140 = vpop.f32.mrb[0].mxu0
    %1141 = vdwg.mxu0
    %1142 = vmatprep.subr.bf16.mxu0 %v770
    %1143 = vmatpush1.bf16.msra.mxu0 %v769
    %1144 = vmatprep.subr.bf16.mxu0 %v778
    %1145 = vmatpush1.bf16.msra.mxu0 %v777
    %1146 = vmatprep.subr.bf16.mxu0 %v786
    %1147 = vmatpush1.bf16.msra.mxu0 %v785
    %1148 = vmatprep.subr.bf16.mxu0 %v794
    %1149 = vmatpush1.bf16.msra.mxu0 %v793
    %1150 = vmatprep.subr.bf16.mxu0 %v802
    %1151 = vmatpush1.bf16.msra.mxu0 %v801
    %1152 = vmatprep.subr.bf16.mxu0 %v810
    %1153 = vmatpush1.bf16.msra.mxu0 %v809
    %1154 = vmatprep.subr.bf16.mxu0 %v818
    %1155 = vmatpush1.bf16.msra.mxu0 %v817
    %1156 = vmatprep.subr.bf16.mxu0 %v826
    %1157 = vmatpush1.bf16.msra.mxu0 %v825
    %1158 = vmatprep.subr.bf16.mxu0 %v834
    %1159 = vmatpush1.bf16.msra.mxu0 %v833
    %1160 = vmatprep.subr.bf16.mxu0 %v842
    %1161 = vmatpush1.bf16.msra.mxu0 %v841
    %1162 = vmatprep.subr.bf16.mxu0 %v850
    %1163 = vmatpush1.bf16.msra.mxu0 %v849
    %1164 = vmatprep.subr.bf16.mxu0 %v858
    %1165 = vmatpush1.bf16.msra.mxu0 %v857
    %1166 = vmatprep.subr.bf16.mxu0 %v866
    %1167 = vmatpush1.bf16.msra.mxu0 %v865
    %1168 = vmatprep.subr.bf16.mxu0 %v874
    %1169 = vmatpush1.bf16.msra.mxu0 %v873
    %1170 = vmatprep.subr.bf16.mxu0 %v882
    %1171 = vmatpush1.bf16.msra.mxu0 %v881
    %1172 = vmatprep.subr.bf16.mxu0 %v890
    %1173 = vmatpush1.bf16.msra.mxu0 %v889
    %1174 = vmatprep.mubr.bf16.mxu0 %v376
    %1175 = vmatmul.mubr.bf16.gmra.mrb[0].mxu0 %v375
    %v1176 = vpop.f32.mrb[0].mxu0
    %v1177 = vadd.f32 %v359, %v1176
    %v1178 = vpop.f32.mrb[0].mxu0
    %v1179 = vadd.f32 %v363, %v1178
    %v1180 = vpop.f32.mrb[0].mxu0
    %v1181 = vpop.f32.mrb[0].mxu0
    %1182 = vdwg.mxu0
    %1183 = vst [vmem:[#allocation10] sm:$0xff] %v1054
    %1184 = vst [vmem:[#allocation10 + $0x8] sm:$0xff] %v1056
    %1185 = vst [vmem:[#allocation10 + $0x10] sm:$0xff] %v1095
    %1186 = vst [vmem:[#allocation10 + $0x18] sm:$0xff] %v1097
    %1187 = vst [vmem:[#allocation10 + $0x20] sm:$0xff] %v1136
    %1188 = vst [vmem:[#allocation10 + $0x28] sm:$0xff] %v1138
    %1189 = vst [vmem:[#allocation10 + $0x30] sm:$0xff] %v1177
    %1190 = vst [vmem:[#allocation10 + $0x38] sm:$0xff] %v1179
    // Predicated region
    $region18: #{tpu_custom_call.1} parent=1 // pred_check
      _
    $region19: #{tpu_custom_call.1} parent=1 // pred_check_branch
      %1192 = sbr.rel (0) target = $region21
    $region20: #{tpu_custom_call.1} parent=1 // pred_region
      %s1193 = sadd.s32 0, 0
      %s1194 = smul.u32 8, %s1193
      %s1196 = ssub.s32 1024, 1024
      %1197 = vsyncadd [#allocation9], %s1196
      %s1198 = smul.addr %s1194, 128
      %s1199 = scalar_lea.hbm %s4, %s1198
      %s1201 = sshll.u32 [#allocation10], 4
      %s1202 = int_to_ptr.vmem [resolvable:$true] %s1201
      %1204 = dma.vmem_to_hbm [thread:$0]  %s1202, 1024, %s1199, [#allocation9]
    $region21: #{tpu_custom_call.1} parent=1 // pred_fallthru
      _
    // Predicated region
    $region22: #{tpu_custom_call.1} parent=1 // pred_check
      _
    $region23: #{tpu_custom_call.1} parent=1 // pred_check_branch
      %1206 = sbr.rel (0) target = $region25
    $region24: #{tpu_custom_call.1} parent=1 // pred_region
      %1207 = dma.done [#allocation9], 1024
    $region25: #{tpu_custom_call.1} parent=1 // pred_fallthru
      _
    %1208 = vsyncpa [#allocation8], 1
    %1209 = vsyncpa [#allocation9], 1
  %1210 = vsyncmov [#allocation4]
  %s1211 = vpop.sfrf %1210
  %p1212 = scmp.eq.s32.totalorder %s1211, 0
  %p1213 = pneg %p1212
  %1215 = shalt.err (%p1213)
  %s1216 = scalar_lea.sflag [#allocation4], 1
  %1217 = vsyncmov %s1216
  %s1218 = vpop.sfrf %1217
  %p1219 = scmp.eq.s32.totalorder %s1218, 0
  %p1220 = pneg %p1219
  %1222 = shalt.err (%p1220)
  %s1223 = scalar_lea.sflag [#allocation4], 2
  %1224 = vsyncmov %s1223
  %s1225 = vpop.sfrf %1224
  %p1226 = scmp.eq.s32.totalorder %s1225, 0
  %p1227 = pneg %p1226
  %1229 = shalt.err (%p1227)
  %s1230 = scalar_lea.sflag [#allocation4], 3
  %1231 = vsyncmov %s1230
  %s1232 = vpop.sfrf %1231
  %p1233 = scmp.eq.s32.totalorder %s1232, 0
  %p1234 = pneg %p1233
  %1236 = shalt.err (%p1234)
  %s1237 = scalar_lea.sflag [#allocation4], 4
  %1238 = vsyncmov %s1237
  %s1239 = vpop.sfrf %1238
  %p1240 = scmp.eq.s32.totalorder %s1239, 0
  %p1241 = pneg %p1240
  %1243 = shalt.err (%p1241)
  %s1244 = scalar_lea.sflag [#allocation4], 5
  %1245 = vsyncmov %s1244
  %s1246 = vpop.sfrf %1245
  %p1247 = scmp.eq.s32.totalorder %s1246, 0
  %p1248 = pneg %p1247
  %1250 = shalt.err (%p1248)
  %s1251 = scalar_lea.sflag [#allocation4], 6
  %1252 = vsyncmov %s1251
  %s1253 = vpop.sfrf %1252
  %p1254 = scmp.eq.s32.totalorder %s1253, 0
  %p1255 = pneg %p1254
  %1257 = shalt.err (%p1255)
  %s1258 = scalar_lea.sflag [#allocation4], 7
  %1259 = vsyncmov %s1258
  %s1260 = vpop.sfrf %1259
  %p1261 = scmp.eq.s32.totalorder %s1260, 0
  %p1262 = pneg %p1261
  %1264 = shalt.err (%p1262)

</llo_original>
